<compile_context>
chip_gen: v5e
topology: v5e:2x2
jax: 0.10.0
libtpu: 0.0.40
codegen_flags: <defaults>
</compile_context>

<pallas_src>
import functools

import jax
import jax.numpy as jnp
from jax.experimental import pallas as pl
from jax.experimental.pallas import tpu as pltpu

EPS = 1e-5  # nn.BatchNorm2d default

_RESIDENT_MAX_BYTES = 4 * 1024 * 1024   # fused path if f32 slab <= 4 MiB
_VMEM_LIMIT = 40 * 1024 * 1024          # explicit scoped-VMEM limit (fits v7x 64 MiB)


# --------------------------------------------------------------------------
# Fused resident path: whole (padded) activation lives in VMEM for one call.
# --------------------------------------------------------------------------
def _bn_fused_kernel(x_ref, g_ref, b_ref, o_ref, *, count, eps):
    # x_ref/o_ref: (N, C, HWp)   g_ref/b_ref: (C, 1)
    n = x_ref.shape[0]
    x0 = x_ref[0].astype(jnp.float32)                   # (C, HWp)
    s = x0
    q = x0 * x0
    for b in range(1, n):                               # VALU adds over batch
        xb = x_ref[b].astype(jnp.float32)
        s = s + xb
        q = q + xb * xb
    inv_count = 1.0 / count
    mean = jnp.sum(s, axis=-1, keepdims=True) * inv_count        # (C, 1)
    ex2 = jnp.sum(q, axis=-1, keepdims=True) * inv_count
    var = jnp.maximum(ex2 - mean * mean, 0.0)                    # biased variance
    scale = g_ref[...] * jax.lax.rsqrt(var + eps)                # (C, 1)
    shift = b_ref[...] - mean * scale
    for b in range(n):
        xb = x_ref[b].astype(jnp.float32)
        o_ref[b] = (xb * scale + shift).astype(o_ref.dtype)


# --------------------------------------------------------------------------
# Streaming fallback, pass 1: per-batch-block partial sum / sum-of-squares.
# --------------------------------------------------------------------------
def _bn_stats_kernel(x_ref, psum_ref, psumsq_ref, sacc_ref, qacc_ref):
    # x_ref: (NB, C, T)   psum_ref/psumsq_ref: (1, C, 1)   sacc/qacc: (C, 128)
    j = pl.program_id(1)

    @pl.when(j == 0)
    def _init():
        sacc_ref[...] = jnp.zeros_like(sacc_ref)
        qacc_ref[...] = jnp.zeros_like(qacc_ref)

    nb, _, t = x_ref.shape
    # Fold the batch sub-block with plain VALU adds.
    x0 = x_ref[0].astype(jnp.float32)                    # (C, T)
    s_t = x0
    q_t = x0 * x0
    for b in range(1, nb):
        xb = x_ref[b].astype(jnp.float32)
        s_t = s_t + xb
        q_t = q_t + xb * xb
    # Fold lane strips into dense (C, 128) accumulators (VALU adds, unmasked
    # stores); the single cross-lane XLU reduce only happens in the finalize.
    s = s_t[:, 0:128]
    q = q_t[:, 0:128]
    for k in range(1, t // 128):
        lo = k * 128
        s = s + s_t[:, lo:lo + 128]
        q = q + q_t[:, lo:lo + 128]
    sacc_ref[...] += s
    qacc_ref[...] += q

    @pl.when(j == pl.num_programs(1) - 1)
    def _finalize():
        psum_ref[0] = jnp.sum(sacc_ref[...], axis=-1, keepdims=True)
        psumsq_ref[0] = jnp.sum(qacc_ref[...], axis=-1, keepdims=True)


# --------------------------------------------------------------------------
# Streaming fallback, pass 2: y = x * scale + shift.
# --------------------------------------------------------------------------
def _bn_apply_kernel(x_ref, scale_ref, shift_ref, o_ref):
    # x_ref/o_ref: (NB, C, T)   scale_ref/shift_ref: (C, 1)
    scale = scale_ref[...]
    shift = shift_ref[...]
    for b in range(x_ref.shape[0]):
        xb = x_ref[b].astype(jnp.float32)
        o_ref[b] = (xb * scale + shift).astype(o_ref.dtype)


def _pick_tiling(n, c, hw_pad, itemsize):
    """Lane tile (multiple of 128 dividing hw_pad) and batch block size."""
    t = 128
    for cand in (8192, 4096, 2048, 1024, 512, 256, 128):
        if hw_pad % cand == 0:
            t = cand
            break
    # Grow per-step payload toward ~2-4 MiB so each grid step amortizes the
    # ~0.35 us fixed overhead even at v7x's 3.2 TB/s HBM bandwidth.
    bytes_per_row = c * t * max(itemsize, 4)
    nb = 1
    for cand in (8, 4, 2):
        if n % cand == 0 and cand * bytes_per_row <= 4 * 1024 * 1024:
            nb = cand
            break
    return nb, t


def batchnorm2d(x_nchw, gamma, beta, eps=EPS,
                resident_max_bytes=_RESIDENT_MAX_BYTES):
    """Training-mode BatchNorm2d forward.  x_nchw: (N, C, H, W)."""
    n, c, h, w = x_nchw.shape
    hw = h * w
    count = float(n * hw)                       # pad excluded from statistics

    # Free reshape of contiguous trailing dims: channels on sublanes, spatial on
    # lanes.  Pad the lane axis to a multiple of 128 so all stores are dense.
    hw_pad = ((hw + 127) // 128) * 128
    x3 = x_nchw.reshape(n, c, hw)
    if hw_pad != hw:
        x3 = jnp.pad(x3, ((0, 0), (0, 0), (0, hw_pad - hw)))

    g2 = gamma.astype(jnp.float32).reshape(c, 1)
    b2 = beta.astype(jnp.float32).reshape(c, 1)

    slab_f32 = n * c * hw_pad * 4
    itemsize = jnp.dtype(x_nchw.dtype).itemsize

    if slab_f32 <= resident_max_bytes:
        # ---- Fused resident path: one kernel, x stays in VMEM -------------
        y3 = pl.pallas_call(
            functools.partial(_bn_fused_kernel, count=count, eps=eps),
            out_shape=jax.ShapeDtypeStruct((n, c, hw_pad), x_nchw.dtype),
            compiler_params=pltpu.CompilerParams(vmem_limit_bytes=_VMEM_LIMIT),
        )(x3, g2, b2)
    else:
        # ---- Streaming fallback --------------------------------------------
        nb, t = _pick_tiling(n, c, hw_pad, itemsize)
        n_nb = n // nb
        n_t = hw_pad // t
        grid = (n_nb, n_t)

        x_spec = pl.BlockSpec((nb, c, t), lambda i, j: (i, 0, j))
        part_spec = pl.BlockSpec((1, c, 1), lambda i, j: (i, 0, 0))
        vec_spec = pl.BlockSpec((c, 1), lambda i, j: (0, 0))

        # Pass 1: per-batch-block partial sums (leading axis "parallel" so v7x
        # can shard pass 1 across both TensorCores; combine is a tiny JAX op).
        psum, psumsq = pl.pallas_call(
            _bn_stats_kernel,
            out_shape=(jax.ShapeDtypeStruct((n_nb, c, 1), jnp.float32),
                       jax.ShapeDtypeStruct((n_nb, c, 1), jnp.float32)),
            grid_spec=pltpu.PrefetchScalarGridSpec(
                num_scalar_prefetch=0,
                grid=grid,
                in_specs=[x_spec],
                out_specs=[part_spec, part_spec],
                scratch_shapes=[pltpu.VMEM((c, 128), jnp.float32),
                                pltpu.VMEM((c, 128), jnp.float32)],
            ),
            compiler_params=pltpu.CompilerParams(
                dimension_semantics=("parallel", "arbitrary"),
                vmem_limit_bytes=_VMEM_LIMIT),
        )(x3)

        # Tiny (C,)-sized combine + scale/shift derivation in plain JAX.
        total = jnp.sum(psum[:, :, 0], axis=0)
        totalsq = jnp.sum(psumsq[:, :, 0], axis=0)
        mean = total / count
        var = jnp.maximum(totalsq / count - mean * mean, 0.0)
        scale_vec = gamma.astype(jnp.float32) * jax.lax.rsqrt(var + eps)
        shift_vec = beta.astype(jnp.float32) - mean * scale_vec
        scale = scale_vec.reshape(c, 1)
        shift = shift_vec.reshape(c, 1)

        # Pass 2: streamed normalize, fully parallel grid.
        y3 = pl.pallas_call(
            _bn_apply_kernel,
            out_shape=jax.ShapeDtypeStruct((n, c, hw_pad), x_nchw.dtype),
            grid_spec=pltpu.PrefetchScalarGridSpec(
                num_scalar_prefetch=0,
                grid=grid,
                in_specs=[x_spec, vec_spec, vec_spec],
                out_specs=x_spec,
            ),
            compiler_params=pltpu.CompilerParams(
                dimension_semantics=("parallel", "parallel"),
                vmem_limit_bytes=_VMEM_LIMIT),
        )(x3, scale, shift)

    if hw_pad != hw:
        y3 = y3[:, :, :hw]
    return y3.reshape(n, c, h, w)


def _reference(x, gamma, beta, eps=EPS):
    mean = jnp.mean(x, axis=(0, 2, 3), keepdims=True)
    var = jnp.mean((x - mean) ** 2, axis=(0, 2, 3), keepdims=True)
    c = x.shape[1]
    return (x - mean) / jnp.sqrt(var + eps) * gamma.reshape(1, c, 1, 1) \
        + beta.reshape(1, c, 1, 1)


if __name__ == "__main__":
    key = jax.random.PRNGKey(0)
    C = 100  # BatchNorm2d(100)

    # nn.BatchNorm2d default init: weight=1, bias=0 (deterministic, no checkpoint)
    gamma = jnp.ones((C,), dtype=jnp.float32)
    beta = jnp.zeros((C,), dtype=jnp.float32)

    # 1) Small aligned shape -> fused resident path.
    k1, k2 = jax.random.split(key)
    x1 = jax.random.normal(k1, (2, C, 16, 16), dtype=jnp.float32)
    y1 = batchnorm2d(x1, gamma, beta)
    jax.block_until_ready(y1)
    assert jnp.allclose(y1, _reference(x1, gamma, beta), atol=1e-4, rtol=1e-4), \
        "fused path mismatch vs reference"

    # 2) Unaligned H*W, streaming path forced -> exercises padding, 2-D grid,
    #    partial-sum combine and the apply pass.
    x2 = jax.random.normal(k2, (2, C, 14, 14), dtype=jnp.float32)
    y2 = batchnorm2d(x2, gamma, beta, resident_max_bytes=0)
    jax.block_until_ready(y2)
    assert jnp.allclose(y2, _reference(x2, gamma, beta), atol=1e-4, rtol=1e-4), \
        "streaming path mismatch vs reference"

    print("KERNEL_OK")
</pallas_src>

<mosaic_0001>
module attributes {stable_mosaic.version = 11 : i64} {
  func.func @_bn_fused_kernel(%arg0: memref<2x100x256xf32, #tpu.memory_space<vmem>>, %arg1: memref<100x1xf32, #tpu.memory_space<vmem>>, %arg2: memref<100x1xf32, #tpu.memory_space<vmem>>, %arg3: memref<2x100x256xf32, #tpu.memory_space<vmem>>) attributes {dimension_semantics = [], scalar_prefetch = 0 : i64, scratch_operands = 0 : i64, tpu.core_type = #tpu.core_type<tc>} {
    %c0 = arith.constant 0 : index
    %c0_0 = arith.constant 0 : index
    %c0_1 = arith.constant 0 : index
    %0 = vector.load %arg0[%c0, %c0_0, %c0_1] : memref<2x100x256xf32, #tpu.memory_space<vmem>>, vector<1x100x256xf32>
    %1 = vector.shape_cast %0 : vector<1x100x256xf32> to vector<100x256xf32>
    %2 = arith.mulf %1, %1 : vector<100x256xf32>
    %c1 = arith.constant 1 : index
    %c0_2 = arith.constant 0 : index
    %c0_3 = arith.constant 0 : index
    %3 = vector.load %arg0[%c1, %c0_2, %c0_3] : memref<2x100x256xf32, #tpu.memory_space<vmem>>, vector<1x100x256xf32>
    %4 = vector.shape_cast %3 : vector<1x100x256xf32> to vector<100x256xf32>
    %5 = arith.addf %1, %4 : vector<100x256xf32>
    %6 = arith.mulf %4, %4 : vector<100x256xf32>
    %7 = arith.addf %2, %6 : vector<100x256xf32>
    %cst = arith.constant dense<0.000000e+00> : vector<100xf32>
    %8 = vector.multi_reduction <add>, %5, %cst [1] : vector<100x256xf32> to vector<100xf32>
    %9 = vector.shape_cast %8 : vector<100xf32> to vector<100x1xf32>
    %cst_4 = arith.constant 0.001953125 : f32
    %10 = vector.broadcast %cst_4 : f32 to vector<100x1xf32>
    %11 = arith.mulf %9, %10 : vector<100x1xf32>
    %cst_5 = arith.constant dense<0.000000e+00> : vector<100xf32>
    %12 = vector.multi_reduction <add>, %7, %cst_5 [1] : vector<100x256xf32> to vector<100xf32>
    %13 = vector.shape_cast %12 : vector<100xf32> to vector<100x1xf32>
    %cst_6 = arith.constant 0.001953125 : f32
    %14 = vector.broadcast %cst_6 : f32 to vector<100x1xf32>
    %15 = arith.mulf %13, %14 : vector<100x1xf32>
    %16 = arith.mulf %11, %11 : vector<100x1xf32>
    %17 = arith.subf %15, %16 : vector<100x1xf32>
    %cst_7 = arith.constant 0.000000e+00 : f32
    %18 = vector.broadcast %cst_7 : f32 to vector<100x1xf32>
    %19 = arith.maximumf %17, %18 : vector<100x1xf32>
    %c0_8 = arith.constant 0 : index
    %c0_9 = arith.constant 0 : index
    %20 = vector.load %arg1[%c0_8, %c0_9] : memref<100x1xf32, #tpu.memory_space<vmem>>, vector<100x1xf32>
    %cst_10 = arith.constant 9.99999974E-6 : f32
    %21 = vector.broadcast %cst_10 : f32 to vector<100x1xf32>
    %22 = arith.addf %19, %21 : vector<100x1xf32>
    %23 = math.rsqrt %22 : vector<100x1xf32>
    %24 = arith.mulf %20, %23 : vector<100x1xf32>
    %c0_11 = arith.constant 0 : index
    %c0_12 = arith.constant 0 : index
    %25 = vector.load %arg2[%c0_11, %c0_12] : memref<100x1xf32, #tpu.memory_space<vmem>>, vector<100x1xf32>
    %26 = arith.mulf %11, %24 : vector<100x1xf32>
    %27 = arith.subf %25, %26 : vector<100x1xf32>
    %c0_13 = arith.constant 0 : index
    %c0_14 = arith.constant 0 : index
    %c0_15 = arith.constant 0 : index
    %28 = vector.load %arg0[%c0_13, %c0_14, %c0_15] : memref<2x100x256xf32, #tpu.memory_space<vmem>>, vector<1x100x256xf32>
    %29 = vector.shape_cast %28 : vector<1x100x256xf32> to vector<100x256xf32>
    %30 = vector.broadcast %24 : vector<100x1xf32> to vector<100x256xf32>
    %31 = arith.mulf %29, %30 : vector<100x256xf32>
    %32 = vector.broadcast %27 : vector<100x1xf32> to vector<100x256xf32>
    %33 = arith.addf %31, %32 : vector<100x256xf32>
    %c0_16 = arith.constant 0 : index
    %c0_17 = arith.constant 0 : index
    %c0_18 = arith.constant 0 : index
    %34 = vector.load %arg3[%c0_16, %c0_17, %c0_18] : memref<2x100x256xf32, #tpu.memory_space<vmem>>, vector<1x100x256xf32>
    %35 = vector.shape_cast %34 : vector<1x100x256xf32> to vector<100x256xf32>
    %36 = vector.shape_cast %33 : vector<100x256xf32> to vector<1x100x256xf32>
    tpu.vector_store %arg3[%c0_16, %c0_17, %c0_18], %36 {strides = array<i32>} : memref<2x100x256xf32, #tpu.memory_space<vmem>>, vector<1x100x256xf32>,
    %c1_19 = arith.constant 1 : index
    %c0_20 = arith.constant 0 : index
    %c0_21 = arith.constant 0 : index
    %37 = vector.load %arg0[%c1_19, %c0_20, %c0_21] : memref<2x100x256xf32, #tpu.memory_space<vmem>>, vector<1x100x256xf32>
    %38 = vector.shape_cast %37 : vector<1x100x256xf32> to vector<100x256xf32>
    %39 = vector.broadcast %24 : vector<100x1xf32> to vector<100x256xf32>
    %40 = arith.mulf %38, %39 : vector<100x256xf32>
    %41 = vector.broadcast %27 : vector<100x1xf32> to vector<100x256xf32>
    %42 = arith.addf %40, %41 : vector<100x256xf32>
    %c1_22 = arith.constant 1 : index
    %c0_23 = arith.constant 0 : index
    %c0_24 = arith.constant 0 : index
    %43 = vector.load %arg3[%c1_22, %c0_23, %c0_24] : memref<2x100x256xf32, #tpu.memory_space<vmem>>, vector<1x100x256xf32>
    %44 = vector.shape_cast %43 : vector<1x100x256xf32> to vector<100x256xf32>
    %45 = vector.shape_cast %42 : vector<100x256xf32> to vector<1x100x256xf32>
    tpu.vector_store %arg3[%c1_22, %c0_23, %c0_24], %45 {strides = array<i32>} : memref<2x100x256xf32, #tpu.memory_space<vmem>>, vector<1x100x256xf32>,
    return
  }
}

</mosaic_0001>

<llo_original>
// kernel: tpu_custom_call.1
$region0: #{tpu_custom_call.1}
  #allocation0 [shape = 'u32[]', space=smem, size = 0x4, offset = 0x4, fixed_abs, tag = 'smem constant byte address 0x4 - core index']
  #allocation1 [shape = 'u32[72,128]{1,0:T(1,128)}', space=vmem, size = 0x9000, scoped, tag = 'internal scratch']
  %s0 = inlined_call_operand.vmem [shape: f32[2,100,256], index: 0, kind: input, shape index: {}]
  %s1 = inlined_call_operand.vmem [shape: f32[100,1], index: 1, kind: input, shape index: {}]
  %s2 = inlined_call_operand.vmem [shape: f32[100,1], index: 2, kind: input, shape index: {}]
  %s3 = inlined_call_operand.vmem [shape: f32[2,100,256], index: 3, kind: output, shape index: {}]
  %s4 = sld [smem:[#allocation0]]
  $region22: #{tpu_custom_call.1} parent=0
    _
  %s6 = ssub.s32 1, %s4
  %s7 = scalar_select 0, %s6, %s4
  // Predicated region
  $region2: #{tpu_custom_call.1} parent=0 // pred_check
    _
  $region3: #{tpu_custom_call.1} parent=0 // pred_check_branch
    %9 = sbr.rel (0) target = $region5
  $region4: #{tpu_custom_call.1} parent=0 // pred_region
    _
  $region5: #{tpu_custom_call.1} parent=0 // pred_fallthru
    _
  // Predicated region
  $region6: #{tpu_custom_call.1} parent=0 // pred_check
    _
  $region7: #{tpu_custom_call.1} parent=0 // pred_check_branch
    %11 = sbr.rel (0) target = $region9
  $region8: #{tpu_custom_call.1} parent=0 // pred_region
    _
  $region9: #{tpu_custom_call.1} parent=0 // pred_fallthru
    _
  // Predicated region
  $region10: #{tpu_custom_call.1} parent=0 // pred_check
    _
  $region11: #{tpu_custom_call.1} parent=0 // pred_check_branch
    %13 = sbr.rel (0) target = $region13
  $region12: #{tpu_custom_call.1} parent=0 // pred_region
    _
  $region13: #{tpu_custom_call.1} parent=0 // pred_fallthru
    _
  %v14 = vld [vmem:[%s0] sm:$0xff]
  %v15 = vld [vmem:[%s0 + $0x8] sm:$0xff]
  %v16 = vld [vmem:[%s0 + $0x10] sm:$0xff]
  %v17 = vld [vmem:[%s0 + $0x18] sm:$0xff]
  %v18 = vld [vmem:[%s0 + $0x20] sm:$0xff]
  %v19 = vld [vmem:[%s0 + $0x28] sm:$0xff]
  %v20 = vld [vmem:[%s0 + $0x30] sm:$0xff]
  %v21 = vld [vmem:[%s0 + $0x38] sm:$0xff]
  %v22 = vld [vmem:[%s0 + $0x40] sm:$0xff]
  %v23 = vld [vmem:[%s0 + $0x48] sm:$0xff]
  %v24 = vld [vmem:[%s0 + $0x50] sm:$0xff]
  %v25 = vld [vmem:[%s0 + $0x58] sm:$0xff]
  %v26 = vld [vmem:[%s0 + $0x60] sm:$0xff]
  %v27 = vld [vmem:[%s0 + $0x68] sm:$0xff]
  %v28 = vld [vmem:[%s0 + $0x70] sm:$0xff]
  %v29 = vld [vmem:[%s0 + $0x78] sm:$0xff]
  %v30 = vld [vmem:[%s0 + $0x80] sm:$0xff]
  %v31 = vld [vmem:[%s0 + $0x88] sm:$0xff]
  %v32 = vld [vmem:[%s0 + $0x90] sm:$0xff]
  %v33 = vld [vmem:[%s0 + $0x98] sm:$0xff]
  %v34 = vld [vmem:[%s0 + $0xa0] sm:$0xff]
  %v35 = vld [vmem:[%s0 + $0xa8] sm:$0xff]
  %v36 = vld [vmem:[%s0 + $0xb0] sm:$0xff]
  %v37 = vld [vmem:[%s0 + $0xb8] sm:$0xff]
  %v38 = vld [vmem:[%s0 + $0xc0] sm:$0xf]
  %v39 = vld [vmem:[%s0 + $0xc8] sm:$0xf]
  %v40 = vmul.f32 %v14, %v14
  %v41 = vmul.f32 %v15, %v15
  %v42 = vmul.f32 %v16, %v16
  %v43 = vmul.f32 %v17, %v17
  %v44 = vmul.f32 %v18, %v18
  %v45 = vmul.f32 %v19, %v19
  %v46 = vmul.f32 %v20, %v20
  %v47 = vmul.f32 %v21, %v21
  %v48 = vmul.f32 %v22, %v22
  %v49 = vmul.f32 %v23, %v23
  %v50 = vmul.f32 %v24, %v24
  %v51 = vmul.f32 %v25, %v25
  %v52 = vmul.f32 %v26, %v26
  %v53 = vmul.f32 %v27, %v27
  %v54 = vmul.f32 %v28, %v28
  %v55 = vmul.f32 %v29, %v29
  %v56 = vmul.f32 %v30, %v30
  %v57 = vmul.f32 %v31, %v31
  %v58 = vmul.f32 %v32, %v32
  %v59 = vmul.f32 %v33, %v33
  %v60 = vmul.f32 %v34, %v34
  %v61 = vmul.f32 %v35, %v35
  %v62 = vmul.f32 %v36, %v36
  %v63 = vmul.f32 %v37, %v37
  %v64 = vmul.f32 %v38, %v38
  %v65 = vmul.f32 %v39, %v39
  %s66 = scalar_lea.vmem %s0, 208
  %v67 = vld [vmem:[%s66] sm:$0xff]
  %v68 = vld [vmem:[%s66 + $0x8] sm:$0xff]
  %v69 = vld [vmem:[%s66 + $0x10] sm:$0xff]
  %v70 = vld [vmem:[%s66 + $0x18] sm:$0xff]
  %v71 = vld [vmem:[%s66 + $0x20] sm:$0xff]
  %v72 = vld [vmem:[%s66 + $0x28] sm:$0xff]
  %v73 = vld [vmem:[%s66 + $0x30] sm:$0xff]
  %v74 = vld [vmem:[%s66 + $0x38] sm:$0xff]
  %v75 = vld [vmem:[%s66 + $0x40] sm:$0xff]
  %v76 = vld [vmem:[%s66 + $0x48] sm:$0xff]
  %v77 = vld [vmem:[%s66 + $0x50] sm:$0xff]
  %v78 = vld [vmem:[%s66 + $0x58] sm:$0xff]
  %v79 = vld [vmem:[%s66 + $0x60] sm:$0xff]
  %v80 = vld [vmem:[%s66 + $0x68] sm:$0xff]
  %v81 = vld [vmem:[%s66 + $0x70] sm:$0xff]
  %v82 = vld [vmem:[%s66 + $0x78] sm:$0xff]
  %v83 = vld [vmem:[%s66 + $0x80] sm:$0xff]
  %v84 = vld [vmem:[%s66 + $0x88] sm:$0xff]
  %v85 = vld [vmem:[%s66 + $0x90] sm:$0xff]
  %v86 = vld [vmem:[%s66 + $0x98] sm:$0xff]
  %v87 = vld [vmem:[%s66 + $0xa0] sm:$0xff]
  %v88 = vld [vmem:[%s66 + $0xa8] sm:$0xff]
  %v89 = vld [vmem:[%s66 + $0xb0] sm:$0xff]
  %v90 = vld [vmem:[%s66 + $0xb8] sm:$0xff]
  %v91 = vld [vmem:[%s66 + $0xc0] sm:$0xf]
  %v92 = vld [vmem:[%s66 + $0xc8] sm:$0xf]
  %v93 = vadd.f32 %v14, %v67
  %v94 = vadd.f32 %v15, %v68
  %v95 = vadd.f32 %v16, %v69
  %v96 = vadd.f32 %v17, %v70
  %v97 = vadd.f32 %v18, %v71
  %v98 = vadd.f32 %v19, %v72
  %v99 = vadd.f32 %v20, %v73
  %v100 = vadd.f32 %v21, %v74
  %v101 = vadd.f32 %v22, %v75
  %v102 = vadd.f32 %v23, %v76
  %v103 = vadd.f32 %v24, %v77
  %v104 = vadd.f32 %v25, %v78
  %v105 = vadd.f32 %v26, %v79
  %v106 = vadd.f32 %v27, %v80
  %v107 = vadd.f32 %v28, %v81
  %v108 = vadd.f32 %v29, %v82
  %v109 = vadd.f32 %v30, %v83
  %v110 = vadd.f32 %v31, %v84
  %v111 = vadd.f32 %v32, %v85
  %v112 = vadd.f32 %v33, %v86
  %v113 = vadd.f32 %v34, %v87
  %v114 = vadd.f32 %v35, %v88
  %v115 = vadd.f32 %v36, %v89
  %v116 = vadd.f32 %v37, %v90
  %v117 = vadd.f32 %v38, %v91
  %v118 = vadd.f32 %v39, %v92
  %v119 = vmul.f32 %v67, %v67
  %v120 = vmul.f32 %v68, %v68
  %v121 = vmul.f32 %v69, %v69
  %v122 = vmul.f32 %v70, %v70
  %v123 = vmul.f32 %v71, %v71
  %v124 = vmul.f32 %v72, %v72
  %v125 = vmul.f32 %v73, %v73
  %v126 = vmul.f32 %v74, %v74
  %v127 = vmul.f32 %v75, %v75
  %v128 = vmul.f32 %v76, %v76
  %v129 = vmul.f32 %v77, %v77
  %v130 = vmul.f32 %v78, %v78
  %v131 = vmul.f32 %v79, %v79
  %v132 = vmul.f32 %v80, %v80
  %v133 = vmul.f32 %v81, %v81
  %v134 = vmul.f32 %v82, %v82
  %v135 = vmul.f32 %v83, %v83
  %v136 = vmul.f32 %v84, %v84
  %v137 = vmul.f32 %v85, %v85
  %v138 = vmul.f32 %v86, %v86
  %v139 = vmul.f32 %v87, %v87
  %v140 = vmul.f32 %v88, %v88
  %v141 = vmul.f32 %v89, %v89
  %v142 = vmul.f32 %v90, %v90
  %v143 = vmul.f32 %v91, %v91
  %v144 = vmul.f32 %v92, %v92
  %v145 = vadd.f32 %v40, %v119
  %v146 = vadd.f32 %v41, %v120
  %v147 = vadd.f32 %v42, %v121
  %v148 = vadd.f32 %v43, %v122
  %v149 = vadd.f32 %v44, %v123
  %v150 = vadd.f32 %v45, %v124
  %v151 = vadd.f32 %v46, %v125
  %v152 = vadd.f32 %v47, %v126
  %v153 = vadd.f32 %v48, %v127
  %v154 = vadd.f32 %v49, %v128
  %v155 = vadd.f32 %v50, %v129
  %v156 = vadd.f32 %v51, %v130
  %v157 = vadd.f32 %v52, %v131
  %v158 = vadd.f32 %v53, %v132
  %v159 = vadd.f32 %v54, %v133
  %v160 = vadd.f32 %v55, %v134
  %v161 = vadd.f32 %v56, %v135
  %v162 = vadd.f32 %v57, %v136
  %v163 = vadd.f32 %v58, %v137
  %v164 = vadd.f32 %v59, %v138
  %v165 = vadd.f32 %v60, %v139
  %v166 = vadd.f32 %v61, %v140
  %v167 = vadd.f32 %v62, %v141
  %v168 = vadd.f32 %v63, %v142
  %v169 = vadd.f32 %v64, %v143
  %v170 = vadd.f32 %v65, %v144
  %v171 = vadd.f32 %v93, %v94
  %172 = vadd.xlane.f32.xlu0 %v171
  %v173 = vpop.xlane.xlu0 %172
  %v174 = vadd.f32 %v95, %v96
  %175 = vadd.xlane.f32.xlu0 %v174
  %v176 = vpop.xlane.xlu0 %175
  %v177 = vadd.f32 %v97, %v98
  %178 = vadd.xlane.f32.xlu0 %v177
  %v179 = vpop.xlane.xlu0 %178
  %v180 = vadd.f32 %v99, %v100
  %181 = vadd.xlane.f32.xlu0 %v180
  %v182 = vpop.xlane.xlu0 %181
  %v183 = vadd.f32 %v101, %v102
  %184 = vadd.xlane.f32.xlu0 %v183
  %v185 = vpop.xlane.xlu0 %184
  %v186 = vadd.f32 %v103, %v104
  %187 = vadd.xlane.f32.xlu0 %v186
  %v188 = vpop.xlane.xlu0 %187
  %v189 = vadd.f32 %v105, %v106
  %190 = vadd.xlane.f32.xlu0 %v189
  %v191 = vpop.xlane.xlu0 %190
  %v192 = vadd.f32 %v107, %v108
  %193 = vadd.xlane.f32.xlu0 %v192
  %v194 = vpop.xlane.xlu0 %193
  %v195 = vadd.f32 %v109, %v110
  %196 = vadd.xlane.f32.xlu0 %v195
  %v197 = vpop.xlane.xlu0 %196
  %v198 = vadd.f32 %v111, %v112
  %199 = vadd.xlane.f32.xlu0 %v198
  %v200 = vpop.xlane.xlu0 %199
  %v201 = vadd.f32 %v113, %v114
  %202 = vadd.xlane.f32.xlu0 %v201
  %v203 = vpop.xlane.xlu0 %202
  %v204 = vadd.f32 %v115, %v116
  %205 = vadd.xlane.f32.xlu0 %v204
  %v206 = vpop.xlane.xlu0 %205
  %vm207 = vcmask 1043456
  %v208 = vsel %vm207, %v117, 0.0
  %v209 = vsel %vm207, %v118, 0.0
  %v210 = vadd.f32 %v208, %v209
  %211 = vadd.xlane.f32.xlu0 %v210
  %v212 = vpop.xlane.xlu0 %211
  %v213 = vmul.f32 %v173, 0.001953125
  %v214 = vmul.f32 %v176, 0.001953125
  %v215 = vmul.f32 %v179, 0.001953125
  %v216 = vmul.f32 %v182, 0.001953125
  %v217 = vmul.f32 %v185, 0.001953125
  %v218 = vmul.f32 %v188, 0.001953125
  %v219 = vmul.f32 %v191, 0.001953125
  %v220 = vmul.f32 %v194, 0.001953125
  %v221 = vmul.f32 %v197, 0.001953125
  %v222 = vmul.f32 %v200, 0.001953125
  %v223 = vmul.f32 %v203, 0.001953125
  %v224 = vmul.f32 %v206, 0.001953125
  %v225 = vmul.f32 %v212, 0.001953125
  %v226 = vadd.f32 %v145, %v146
  %227 = vadd.xlane.f32.xlu0 %v226
  %v228 = vpop.xlane.xlu0 %227
  %v229 = vadd.f32 %v147, %v148
  %230 = vadd.xlane.f32.xlu0 %v229
  %v231 = vpop.xlane.xlu0 %230
  %v232 = vadd.f32 %v149, %v150
  %233 = vadd.xlane.f32.xlu0 %v232
  %v234 = vpop.xlane.xlu0 %233
  %v235 = vadd.f32 %v151, %v152
  %236 = vadd.xlane.f32.xlu0 %v235
  %v237 = vpop.xlane.xlu0 %236
  %v238 = vadd.f32 %v153, %v154
  %239 = vadd.xlane.f32.xlu0 %v238
  %v240 = vpop.xlane.xlu0 %239
  %v241 = vadd.f32 %v155, %v156
  %242 = vadd.xlane.f32.xlu0 %v241
  %v243 = vpop.xlane.xlu0 %242
  %v244 = vadd.f32 %v157, %v158
  %245 = vadd.xlane.f32.xlu0 %v244
  %v246 = vpop.xlane.xlu0 %245
  %v247 = vadd.f32 %v159, %v160
  %248 = vadd.xlane.f32.xlu0 %v247
  %v249 = vpop.xlane.xlu0 %248
  %v250 = vadd.f32 %v161, %v162
  %251 = vadd.xlane.f32.xlu0 %v250
  %v252 = vpop.xlane.xlu0 %251
  %v253 = vadd.f32 %v163, %v164
  %254 = vadd.xlane.f32.xlu0 %v253
  %v255 = vpop.xlane.xlu0 %254
  %v256 = vadd.f32 %v165, %v166
  %257 = vadd.xlane.f32.xlu0 %v256
  %v258 = vpop.xlane.xlu0 %257
  %v259 = vadd.f32 %v167, %v168
  %260 = vadd.xlane.f32.xlu0 %v259
  %v261 = vpop.xlane.xlu0 %260
  %v262 = vsel %vm207, %v169, 0.0
  %v263 = vsel %vm207, %v170, 0.0
  %v264 = vadd.f32 %v262, %v263
  %265 = vadd.xlane.f32.xlu0 %v264
  %v266 = vpop.xlane.xlu0 %265
  %v267 = vmul.f32 %v228, 0.001953125
  %v268 = vmul.f32 %v231, 0.001953125
  %v269 = vmul.f32 %v234, 0.001953125
  %v270 = vmul.f32 %v237, 0.001953125
  %v271 = vmul.f32 %v240, 0.001953125
  %v272 = vmul.f32 %v243, 0.001953125
  %v273 = vmul.f32 %v246, 0.001953125
  %v274 = vmul.f32 %v249, 0.001953125
  %v275 = vmul.f32 %v252, 0.001953125
  %v276 = vmul.f32 %v255, 0.001953125
  %v277 = vmul.f32 %v258, 0.001953125
  %v278 = vmul.f32 %v261, 0.001953125
  %v279 = vmul.f32 %v266, 0.001953125
  %v280 = vmul.f32 %v213, %v213
  %v281 = vmul.f32 %v214, %v214
  %v282 = vmul.f32 %v215, %v215
  %v283 = vmul.f32 %v216, %v216
  %v284 = vmul.f32 %v217, %v217
  %v285 = vmul.f32 %v218, %v218
  %v286 = vmul.f32 %v219, %v219
  %v287 = vmul.f32 %v220, %v220
  %v288 = vmul.f32 %v221, %v221
  %v289 = vmul.f32 %v222, %v222
  %v290 = vmul.f32 %v223, %v223
  %v291 = vmul.f32 %v224, %v224
  %v292 = vmul.f32 %v225, %v225
  %v293 = vsub.f32 %v267, %v280
  %v294 = vsub.f32 %v268, %v281
  %v295 = vsub.f32 %v269, %v282
  %v296 = vsub.f32 %v270, %v283
  %v297 = vsub.f32 %v271, %v284
  %v298 = vsub.f32 %v272, %v285
  %v299 = vsub.f32 %v273, %v286
  %v300 = vsub.f32 %v274, %v287
  %v301 = vsub.f32 %v275, %v288
  %v302 = vsub.f32 %v276, %v289
  %v303 = vsub.f32 %v277, %v290
  %v304 = vsub.f32 %v278, %v291
  %v305 = vsub.f32 %v279, %v292
  %v306 = vmax.f32 %v293, 0.0
  %v307 = vmax.f32 %v294, 0.0
  %v308 = vmax.f32 %v295, 0.0
  %v309 = vmax.f32 %v296, 0.0
  %v310 = vmax.f32 %v297, 0.0
  %v311 = vmax.f32 %v298, 0.0
  %v312 = vmax.f32 %v299, 0.0
  %v313 = vmax.f32 %v300, 0.0
  %v314 = vmax.f32 %v301, 0.0
  %v315 = vmax.f32 %v302, 0.0
  %v316 = vmax.f32 %v303, 0.0
  %v317 = vmax.f32 %v304, 0.0
  %v318 = vmax.f32 %v305, 0.0
  %v319 = vld [vmem:[%s1] sm:$0xff]
  %v320 = vld [vmem:[%s1 + $0x8] sm:$0xff]
  %v321 = vld [vmem:[%s1 + $0x10] sm:$0xff]
  %v322 = vld [vmem:[%s1 + $0x18] sm:$0xff]
  %v323 = vld [vmem:[%s1 + $0x20] sm:$0xff]
  %v324 = vld [vmem:[%s1 + $0x28] sm:$0xff]
  %v325 = vld [vmem:[%s1 + $0x30] sm:$0xff]
  %v326 = vld [vmem:[%s1 + $0x38] sm:$0xff]
  %v327 = vld [vmem:[%s1 + $0x40] sm:$0xff]
  %v328 = vld [vmem:[%s1 + $0x48] sm:$0xff]
  %v329 = vld [vmem:[%s1 + $0x50] sm:$0xff]
  %v330 = vld [vmem:[%s1 + $0x58] sm:$0xff]
  %v331 = vld [vmem:[%s1 + $0x60] sm:$0xf]
  %v332 = vadd.f32 %v306, 1e-05
  %v333 = vadd.f32 %v307, 1e-05
  %v334 = vadd.f32 %v308, 1e-05
  %v335 = vadd.f32 %v309, 1e-05
  %v336 = vadd.f32 %v310, 1e-05
  %v337 = vadd.f32 %v311, 1e-05
  %v338 = vadd.f32 %v312, 1e-05
  %v339 = vadd.f32 %v313, 1e-05
  %v340 = vadd.f32 %v314, 1e-05
  %v341 = vadd.f32 %v315, 1e-05
  %v342 = vadd.f32 %v316, 1e-05
  %v343 = vadd.f32 %v317, 1e-05
  %v344 = vadd.f32 %v318, 1e-05
  %v345 = vrsqrt.pop %v332
  %v346 = vmul.f32 %v345, %v332
  %v347 = vmul.f32 %v346, %v345
  %v348 = vmul.f32 0.5, %v347
  %v349 = vsub.f32 1.5, %v348
  %v350 = vmul.f32 %v345, %v349
  %vm351 = vweird.f32 %v332
  %vm352 = vweird.f32 %v345
  %vm353 = vmor %vm351, %vm352
  %v354 = vsel %vm353, %v345, %v350
  %v355 = vrsqrt.pop %v333
  %v356 = vmul.f32 %v355, %v333
  %v357 = vmul.f32 %v356, %v355
  %v358 = vmul.f32 0.5, %v357
  %v359 = vsub.f32 1.5, %v358
  %v360 = vmul.f32 %v355, %v359
  %vm361 = vweird.f32 %v333
  %vm362 = vweird.f32 %v355
  %vm363 = vmor %vm361, %vm362
  %v364 = vsel %vm363, %v355, %v360
  %v365 = vrsqrt.pop %v334
  %v366 = vmul.f32 %v365, %v334
  %v367 = vmul.f32 %v366, %v365
  %v368 = vmul.f32 0.5, %v367
  %v369 = vsub.f32 1.5, %v368
  %v370 = vmul.f32 %v365, %v369
  %vm371 = vweird.f32 %v334
  %vm372 = vweird.f32 %v365
  %vm373 = vmor %vm371, %vm372
  %v374 = vsel %vm373, %v365, %v370
  %v375 = vrsqrt.pop %v335
  %v376 = vmul.f32 %v375, %v335
  %v377 = vmul.f32 %v376, %v375
  %v378 = vmul.f32 0.5, %v377
  %v379 = vsub.f32 1.5, %v378
  %v380 = vmul.f32 %v375, %v379
  %vm381 = vweird.f32 %v335
  %vm382 = vweird.f32 %v375
  %vm383 = vmor %vm381, %vm382
  %v384 = vsel %vm383, %v375, %v380
  %v385 = vrsqrt.pop %v336
  %v386 = vmul.f32 %v385, %v336
  %v387 = vmul.f32 %v386, %v385
  %v388 = vmul.f32 0.5, %v387
  %v389 = vsub.f32 1.5, %v388
  %v390 = vmul.f32 %v385, %v389
  %vm391 = vweird.f32 %v336
  %vm392 = vweird.f32 %v385
  %vm393 = vmor %vm391, %vm392
  %v394 = vsel %vm393, %v385, %v390
  %v395 = vrsqrt.pop %v337
  %v396 = vmul.f32 %v395, %v337
  %v397 = vmul.f32 %v396, %v395
  %v398 = vmul.f32 0.5, %v397
  %v399 = vsub.f32 1.5, %v398
  %v400 = vmul.f32 %v395, %v399
  %vm401 = vweird.f32 %v337
  %vm402 = vweird.f32 %v395
  %vm403 = vmor %vm401, %vm402
  %v404 = vsel %vm403, %v395, %v400
  %v405 = vrsqrt.pop %v338
  %v406 = vmul.f32 %v405, %v338
  %v407 = vmul.f32 %v406, %v405
  %v408 = vmul.f32 0.5, %v407
  %v409 = vsub.f32 1.5, %v408
  %v410 = vmul.f32 %v405, %v409
  %vm411 = vweird.f32 %v338
  %vm412 = vweird.f32 %v405
  %vm413 = vmor %vm411, %vm412
  %v414 = vsel %vm413, %v405, %v410
  %v415 = vrsqrt.pop %v339
  %v416 = vmul.f32 %v415, %v339
  %v417 = vmul.f32 %v416, %v415
  %v418 = vmul.f32 0.5, %v417
  %v419 = vsub.f32 1.5, %v418
  %v420 = vmul.f32 %v415, %v419
  %vm421 = vweird.f32 %v339
  %vm422 = vweird.f32 %v415
  %vm423 = vmor %vm421, %vm422
  %v424 = vsel %vm423, %v415, %v420
  %v425 = vrsqrt.pop %v340
  %v426 = vmul.f32 %v425, %v340
  %v427 = vmul.f32 %v426, %v425
  %v428 = vmul.f32 0.5, %v427
  %v429 = vsub.f32 1.5, %v428
  %v430 = vmul.f32 %v425, %v429
  %vm431 = vweird.f32 %v340
  %vm432 = vweird.f32 %v425
  %vm433 = vmor %vm431, %vm432
  %v434 = vsel %vm433, %v425, %v430
  %v435 = vrsqrt.pop %v341
  %v436 = vmul.f32 %v435, %v341
  %v437 = vmul.f32 %v436, %v435
  %v438 = vmul.f32 0.5, %v437
  %v439 = vsub.f32 1.5, %v438
  %v440 = vmul.f32 %v435, %v439
  %vm441 = vweird.f32 %v341
  %vm442 = vweird.f32 %v435
  %vm443 = vmor %vm441, %vm442
  %v444 = vsel %vm443, %v435, %v440
  %v445 = vrsqrt.pop %v342
  %v446 = vmul.f32 %v445, %v342
  %v447 = vmul.f32 %v446, %v445
  %v448 = vmul.f32 0.5, %v447
  %v449 = vsub.f32 1.5, %v448
  %v450 = vmul.f32 %v445, %v449
  %vm451 = vweird.f32 %v342
  %vm452 = vweird.f32 %v445
  %vm453 = vmor %vm451, %vm452
  %v454 = vsel %vm453, %v445, %v450
  %v455 = vrsqrt.pop %v343
  %v456 = vmul.f32 %v455, %v343
  %v457 = vmul.f32 %v456, %v455
  %v458 = vmul.f32 0.5, %v457
  %v459 = vsub.f32 1.5, %v458
  %v460 = vmul.f32 %v455, %v459
  %vm461 = vweird.f32 %v343
  %vm462 = vweird.f32 %v455
  %vm463 = vmor %vm461, %vm462
  %v464 = vsel %vm463, %v455, %v460
  %v465 = vrsqrt.pop %v344
  %v466 = vmul.f32 %v465, %v344
  %v467 = vmul.f32 %v466, %v465
  %v468 = vmul.f32 0.5, %v467
  %v469 = vsub.f32 1.5, %v468
  %v470 = vmul.f32 %v465, %v469
  %vm471 = vweird.f32 %v344
  %vm472 = vweird.f32 %v465
  %vm473 = vmor %vm471, %vm472
  %v474 = vsel %vm473, %v465, %v470
  %v475 = vmul.f32 %v319, %v354
  %v476 = vmul.f32 %v320, %v364
  %v477 = vmul.f32 %v321, %v374
  %v478 = vmul.f32 %v322, %v384
  %v479 = vmul.f32 %v323, %v394
  %v480 = vmul.f32 %v324, %v404
  %v481 = vmul.f32 %v325, %v414
  %v482 = vmul.f32 %v326, %v424
  %v483 = vmul.f32 %v327, %v434
  %v484 = vmul.f32 %v328, %v444
  %v485 = vmul.f32 %v329, %v454
  %v486 = vmul.f32 %v330, %v464
  %v487 = vmul.f32 %v331, %v474
  %v488 = vld [vmem:[%s2] sm:$0xff]
  %v489 = vld [vmem:[%s2 + $0x8] sm:$0xff]
  %v490 = vld [vmem:[%s2 + $0x10] sm:$0xff]
  %v491 = vld [vmem:[%s2 + $0x18] sm:$0xff]
  %v492 = vld [vmem:[%s2 + $0x20] sm:$0xff]
  %v493 = vld [vmem:[%s2 + $0x28] sm:$0xff]
  %v494 = vld [vmem:[%s2 + $0x30] sm:$0xff]
  %v495 = vld [vmem:[%s2 + $0x38] sm:$0xff]
  %v496 = vld [vmem:[%s2 + $0x40] sm:$0xff]
  %v497 = vld [vmem:[%s2 + $0x48] sm:$0xff]
  %v498 = vld [vmem:[%s2 + $0x50] sm:$0xff]
  %v499 = vld [vmem:[%s2 + $0x58] sm:$0xff]
  %v500 = vld [vmem:[%s2 + $0x60] sm:$0xf]
  %v501 = vmul.f32 %v213, %v475
  %v502 = vmul.f32 %v214, %v476
  %v503 = vmul.f32 %v215, %v477
  %v504 = vmul.f32 %v216, %v478
  %v505 = vmul.f32 %v217, %v479
  %v506 = vmul.f32 %v218, %v480
  %v507 = vmul.f32 %v219, %v481
  %v508 = vmul.f32 %v220, %v482
  %v509 = vmul.f32 %v221, %v483
  %v510 = vmul.f32 %v222, %v484
  %v511 = vmul.f32 %v223, %v485
  %v512 = vmul.f32 %v224, %v486
  %v513 = vmul.f32 %v225, %v487
  %v514 = vsub.f32 %v488, %v501
  %v515 = vsub.f32 %v489, %v502
  %v516 = vsub.f32 %v490, %v503
  %v517 = vsub.f32 %v491, %v504
  %v518 = vsub.f32 %v492, %v505
  %v519 = vsub.f32 %v493, %v506
  %v520 = vsub.f32 %v494, %v507
  %v521 = vsub.f32 %v495, %v508
  %v522 = vsub.f32 %v496, %v509
  %v523 = vsub.f32 %v497, %v510
  %v524 = vsub.f32 %v498, %v511
  %v525 = vsub.f32 %v499, %v512
  %v526 = vsub.f32 %v500, %v513
  %528 = vset.pattern.permute.xlu0 0
  %529 = vperm.xlu0 %528, %v475
  %v530 = vpop.permute.xlu0 %529
  %533 = vset.pattern.permute.xlu0 0
  %534 = vperm.xlu0 %533, %v476
  %v535 = vpop.permute.xlu0 %534
  %538 = vset.pattern.permute.xlu0 0
  %539 = vperm.xlu0 %538, %v477
  %v540 = vpop.permute.xlu0 %539
  %543 = vset.pattern.permute.xlu0 0
  %544 = vperm.xlu0 %543, %v478
  %v545 = vpop.permute.xlu0 %544
  %548 = vset.pattern.permute.xlu0 0
  %549 = vperm.xlu0 %548, %v479
  %v550 = vpop.permute.xlu0 %549
  %553 = vset.pattern.permute.xlu0 0
  %554 = vperm.xlu0 %553, %v480
  %v555 = vpop.permute.xlu0 %554
  %558 = vset.pattern.permute.xlu0 0
  %559 = vperm.xlu0 %558, %v481
  %v560 = vpop.permute.xlu0 %559
  %563 = vset.pattern.permute.xlu0 0
  %564 = vperm.xlu0 %563, %v482
  %v565 = vpop.permute.xlu0 %564
  %568 = vset.pattern.permute.xlu0 0
  %569 = vperm.xlu0 %568, %v483
  %v570 = vpop.permute.xlu0 %569
  %573 = vset.pattern.permute.xlu0 0
  %574 = vperm.xlu0 %573, %v484
  %v575 = vpop.permute.xlu0 %574
  %578 = vset.pattern.permute.xlu0 0
  %579 = vperm.xlu0 %578, %v485
  %v580 = vpop.permute.xlu0 %579
  %583 = vset.pattern.permute.xlu0 0
  %584 = vperm.xlu0 %583, %v486
  %v585 = vpop.permute.xlu0 %584
  %588 = vset.pattern.permute.xlu0 0
  %589 = vperm.xlu0 %588, %v487
  %v590 = vpop.permute.xlu0 %589
  %v592 = vmul.f32 %v14, %v530
  %v593 = vmul.f32 %v15, %v530
  %v594 = vmul.f32 %v16, %v535
  %v595 = vmul.f32 %v17, %v535
  %v596 = vmul.f32 %v18, %v540
  %v597 = vmul.f32 %v19, %v540
  %v598 = vmul.f32 %v20, %v545
  %v599 = vmul.f32 %v21, %v545
  %v600 = vmul.f32 %v22, %v550
  %v601 = vmul.f32 %v23, %v550
  %v602 = vmul.f32 %v24, %v555
  %v603 = vmul.f32 %v25, %v555
  %v604 = vmul.f32 %v26, %v560
  %v605 = vmul.f32 %v27, %v560
  %v606 = vmul.f32 %v28, %v565
  %v607 = vmul.f32 %v29, %v565
  %v608 = vmul.f32 %v30, %v570
  %v609 = vmul.f32 %v31, %v570
  %v610 = vmul.f32 %v32, %v575
  %v611 = vmul.f32 %v33, %v575
  %v612 = vmul.f32 %v34, %v580
  %v613 = vmul.f32 %v35, %v580
  %v614 = vmul.f32 %v36, %v585
  %v615 = vmul.f32 %v37, %v585
  %v616 = vmul.f32 %v38, %v590
  %v617 = vmul.f32 %v39, %v590
  %619 = vset.pattern.permute.xlu0 0
  %620 = vperm.xlu0 %619, %v514
  %v621 = vpop.permute.xlu0 %620
  %624 = vset.pattern.permute.xlu0 0
  %625 = vperm.xlu0 %624, %v515
  %v626 = vpop.permute.xlu0 %625
  %629 = vset.pattern.permute.xlu0 0
  %630 = vperm.xlu0 %629, %v516
  %v631 = vpop.permute.xlu0 %630
  %634 = vset.pattern.permute.xlu0 0
  %635 = vperm.xlu0 %634, %v517
  %v636 = vpop.permute.xlu0 %635
  %639 = vset.pattern.permute.xlu0 0
  %640 = vperm.xlu0 %639, %v518
  %v641 = vpop.permute.xlu0 %640
  %644 = vset.pattern.permute.xlu0 0
  %645 = vperm.xlu0 %644, %v519
  %v646 = vpop.permute.xlu0 %645
  %649 = vset.pattern.permute.xlu0 0
  %650 = vperm.xlu0 %649, %v520
  %v651 = vpop.permute.xlu0 %650
  %654 = vset.pattern.permute.xlu0 0
  %655 = vperm.xlu0 %654, %v521
  %v656 = vpop.permute.xlu0 %655
  %659 = vset.pattern.permute.xlu0 0
  %660 = vperm.xlu0 %659, %v522
  %v661 = vpop.permute.xlu0 %660
  %664 = vset.pattern.permute.xlu0 0
  %665 = vperm.xlu0 %664, %v523
  %v666 = vpop.permute.xlu0 %665
  %669 = vset.pattern.permute.xlu0 0
  %670 = vperm.xlu0 %669, %v524
  %v671 = vpop.permute.xlu0 %670
  %674 = vset.pattern.permute.xlu0 0
  %675 = vperm.xlu0 %674, %v525
  %v676 = vpop.permute.xlu0 %675
  %679 = vset.pattern.permute.xlu0 0
  %680 = vperm.xlu0 %679, %v526
  %v681 = vpop.permute.xlu0 %680
  %v683 = vadd.f32 %v592, %v621
  %v684 = vadd.f32 %v593, %v621
  %v685 = vadd.f32 %v594, %v626
  %v686 = vadd.f32 %v595, %v626
  %v687 = vadd.f32 %v596, %v631
  %v688 = vadd.f32 %v597, %v631
  %v689 = vadd.f32 %v598, %v636
  %v690 = vadd.f32 %v599, %v636
  %v691 = vadd.f32 %v600, %v641
  %v692 = vadd.f32 %v601, %v641
  %v693 = vadd.f32 %v602, %v646
  %v694 = vadd.f32 %v603, %v646
  %v695 = vadd.f32 %v604, %v651
  %v696 = vadd.f32 %v605, %v651
  %v697 = vadd.f32 %v606, %v656
  %v698 = vadd.f32 %v607, %v656
  %v699 = vadd.f32 %v608, %v661
  %v700 = vadd.f32 %v609, %v661
  %v701 = vadd.f32 %v610, %v666
  %v702 = vadd.f32 %v611, %v666
  %v703 = vadd.f32 %v612, %v671
  %v704 = vadd.f32 %v613, %v671
  %v705 = vadd.f32 %v614, %v676
  %v706 = vadd.f32 %v615, %v676
  %v707 = vadd.f32 %v616, %v681
  %v708 = vadd.f32 %v617, %v681
  %709 = vst [vmem:[%s3] sm:$0xff] %v683
  %710 = vst [vmem:[%s3 + $0x8] sm:$0xff] %v684
  %711 = vst [vmem:[%s3 + $0x10] sm:$0xff] %v685
  %712 = vst [vmem:[%s3 + $0x18] sm:$0xff] %v686
  %713 = vst [vmem:[%s3 + $0x20] sm:$0xff] %v687
  %714 = vst [vmem:[%s3 + $0x28] sm:$0xff] %v688
  %715 = vst [vmem:[%s3 + $0x30] sm:$0xff] %v689
  %716 = vst [vmem:[%s3 + $0x38] sm:$0xff] %v690
  %717 = vst [vmem:[%s3 + $0x40] sm:$0xff] %v691
  %718 = vst [vmem:[%s3 + $0x48] sm:$0xff] %v692
  %719 = vst [vmem:[%s3 + $0x50] sm:$0xff] %v693
  %720 = vst [vmem:[%s3 + $0x58] sm:$0xff] %v694
  %721 = vst [vmem:[%s3 + $0x60] sm:$0xff] %v695
  %722 = vst [vmem:[%s3 + $0x68] sm:$0xff] %v696
  %723 = vst [vmem:[%s3 + $0x70] sm:$0xff] %v697
  %724 = vst [vmem:[%s3 + $0x78] sm:$0xff] %v698
  %725 = vst [vmem:[%s3 + $0x80] sm:$0xff] %v699
  %726 = vst [vmem:[%s3 + $0x88] sm:$0xff] %v700
  %727 = vst [vmem:[%s3 + $0x90] sm:$0xff] %v701
  %728 = vst [vmem:[%s3 + $0x98] sm:$0xff] %v702
  %729 = vst [vmem:[%s3 + $0xa0] sm:$0xff] %v703
  %730 = vst [vmem:[%s3 + $0xa8] sm:$0xff] %v704
  %731 = vst [vmem:[%s3 + $0xb0] sm:$0xff] %v705
  %732 = vst [vmem:[%s3 + $0xb8] sm:$0xff] %v706
  %733 = vst [vmem:[%s3 + $0xc0] sm:$0xf] %v707
  %734 = vst [vmem:[%s3 + $0xc8] sm:$0xf] %v708
  %v735 = vld [vmem:[%s66] sm:$0xff]
  %v736 = vld [vmem:[%s66 + $0x8] sm:$0xff]
  %v737 = vld [vmem:[%s66 + $0x10] sm:$0xff]
  %v738 = vld [vmem:[%s66 + $0x18] sm:$0xff]
  %v739 = vld [vmem:[%s66 + $0x20] sm:$0xff]
  %v740 = vld [vmem:[%s66 + $0x28] sm:$0xff]
  %v741 = vld [vmem:[%s66 + $0x30] sm:$0xff]
  %v742 = vld [vmem:[%s66 + $0x38] sm:$0xff]
  %v743 = vld [vmem:[%s66 + $0x40] sm:$0xff]
  %v744 = vld [vmem:[%s66 + $0x48] sm:$0xff]
  %v745 = vld [vmem:[%s66 + $0x50] sm:$0xff]
  %v746 = vld [vmem:[%s66 + $0x58] sm:$0xff]
  %v747 = vld [vmem:[%s66 + $0x60] sm:$0xff]
  %v748 = vld [vmem:[%s66 + $0x68] sm:$0xff]
  %v749 = vld [vmem:[%s66 + $0x70] sm:$0xff]
  %v750 = vld [vmem:[%s66 + $0x78] sm:$0xff]
  %v751 = vld [vmem:[%s66 + $0x80] sm:$0xff]
  %v752 = vld [vmem:[%s66 + $0x88] sm:$0xff]
  %v753 = vld [vmem:[%s66 + $0x90] sm:$0xff]
  %v754 = vld [vmem:[%s66 + $0x98] sm:$0xff]
  %v755 = vld [vmem:[%s66 + $0xa0] sm:$0xff]
  %v756 = vld [vmem:[%s66 + $0xa8] sm:$0xff]
  %v757 = vld [vmem:[%s66 + $0xb0] sm:$0xff]
  %v758 = vld [vmem:[%s66 + $0xb8] sm:$0xff]
  %v759 = vld [vmem:[%s66 + $0xc0] sm:$0xf]
  %v760 = vld [vmem:[%s66 + $0xc8] sm:$0xf]
  %v761 = vmul.f32 %v735, %v530
  %v762 = vmul.f32 %v736, %v530
  %v763 = vmul.f32 %v737, %v535
  %v764 = vmul.f32 %v738, %v535
  %v765 = vmul.f32 %v739, %v540
  %v766 = vmul.f32 %v740, %v540
  %v767 = vmul.f32 %v741, %v545
  %v768 = vmul.f32 %v742, %v545
  %v769 = vmul.f32 %v743, %v550
  %v770 = vmul.f32 %v744, %v550
  %v771 = vmul.f32 %v745, %v555
  %v772 = vmul.f32 %v746, %v555
  %v773 = vmul.f32 %v747, %v560
  %v774 = vmul.f32 %v748, %v560
  %v775 = vmul.f32 %v749, %v565
  %v776 = vmul.f32 %v750, %v565
  %v777 = vmul.f32 %v751, %v570
  %v778 = vmul.f32 %v752, %v570
  %v779 = vmul.f32 %v753, %v575
  %v780 = vmul.f32 %v754, %v575
  %v781 = vmul.f32 %v755, %v580
  %v782 = vmul.f32 %v756, %v580
  %v783 = vmul.f32 %v757, %v585
  %v784 = vmul.f32 %v758, %v585
  %v785 = vmul.f32 %v759, %v590
  %v786 = vmul.f32 %v760, %v590
  %v787 = vadd.f32 %v761, %v621
  %v788 = vadd.f32 %v762, %v621
  %v789 = vadd.f32 %v763, %v626
  %v790 = vadd.f32 %v764, %v626
  %v791 = vadd.f32 %v765, %v631
  %v792 = vadd.f32 %v766, %v631
  %v793 = vadd.f32 %v767, %v636
  %v794 = vadd.f32 %v768, %v636
  %v795 = vadd.f32 %v769, %v641
  %v796 = vadd.f32 %v770, %v641
  %v797 = vadd.f32 %v771, %v646
  %v798 = vadd.f32 %v772, %v646
  %v799 = vadd.f32 %v773, %v651
  %v800 = vadd.f32 %v774, %v651
  %v801 = vadd.f32 %v775, %v656
  %v802 = vadd.f32 %v776, %v656
  %v803 = vadd.f32 %v777, %v661
  %v804 = vadd.f32 %v778, %v661
  %v805 = vadd.f32 %v779, %v666
  %v806 = vadd.f32 %v780, %v666
  %v807 = vadd.f32 %v781, %v671
  %v808 = vadd.f32 %v782, %v671
  %v809 = vadd.f32 %v783, %v676
  %v810 = vadd.f32 %v784, %v676
  %v811 = vadd.f32 %v785, %v681
  %v812 = vadd.f32 %v786, %v681
  %s813 = scalar_lea.vmem %s3, 208
  %814 = vst [vmem:[%s813] sm:$0xff] %v787
  %815 = vst [vmem:[%s813 + $0x8] sm:$0xff] %v788
  %816 = vst [vmem:[%s813 + $0x10] sm:$0xff] %v789
  %817 = vst [vmem:[%s813 + $0x18] sm:$0xff] %v790
  %818 = vst [vmem:[%s813 + $0x20] sm:$0xff] %v791
  %819 = vst [vmem:[%s813 + $0x28] sm:$0xff] %v792
  %820 = vst [vmem:[%s813 + $0x30] sm:$0xff] %v793
  %821 = vst [vmem:[%s813 + $0x38] sm:$0xff] %v794
  %822 = vst [vmem:[%s813 + $0x40] sm:$0xff] %v795
  %823 = vst [vmem:[%s813 + $0x48] sm:$0xff] %v796
  %824 = vst [vmem:[%s813 + $0x50] sm:$0xff] %v797
  %825 = vst [vmem:[%s813 + $0x58] sm:$0xff] %v798
  %826 = vst [vmem:[%s813 + $0x60] sm:$0xff] %v799
  %827 = vst [vmem:[%s813 + $0x68] sm:$0xff] %v800
  %828 = vst [vmem:[%s813 + $0x70] sm:$0xff] %v801
  %829 = vst [vmem:[%s813 + $0x78] sm:$0xff] %v802
  %830 = vst [vmem:[%s813 + $0x80] sm:$0xff] %v803
  %831 = vst [vmem:[%s813 + $0x88] sm:$0xff] %v804
  %832 = vst [vmem:[%s813 + $0x90] sm:$0xff] %v805
  %833 = vst [vmem:[%s813 + $0x98] sm:$0xff] %v806
  %834 = vst [vmem:[%s813 + $0xa0] sm:$0xff] %v807
  %835 = vst [vmem:[%s813 + $0xa8] sm:$0xff] %v808
  %836 = vst [vmem:[%s813 + $0xb0] sm:$0xff] %v809
  %837 = vst [vmem:[%s813 + $0xb8] sm:$0xff] %v810
  %838 = vst [vmem:[%s813 + $0xc0] sm:$0xf] %v811
  %839 = vst [vmem:[%s813 + $0xc8] sm:$0xf] %v812
  // Predicated region
  $region14: #{tpu_custom_call.1} parent=0 // pred_check
    _
  $region15: #{tpu_custom_call.1} parent=0 // pred_check_branch
    %841 = sbr.rel (0) target = $region17
  $region16: #{tpu_custom_call.1} parent=0 // pred_region
    _
  $region17: #{tpu_custom_call.1} parent=0 // pred_fallthru
    _
  // Predicated region
  $region18: #{tpu_custom_call.1} parent=0 // pred_check
    _
  $region19: #{tpu_custom_call.1} parent=0 // pred_check_branch
    %843 = sbr.rel (0) target = $region21
  $region20: #{tpu_custom_call.1} parent=0 // pred_region
    _
  $region21: #{tpu_custom_call.1} parent=0 // pred_fallthru
    _

</llo_original>
